<compile_context>
chip_gen: v7x
topology: tpu7x:2x2x1
jax: 0.10.0
libtpu: 0.0.40
codegen_flags: <defaults>
</compile_context>

<pallas_src>
import jax
import jax.numpy as jnp
from jax import lax
from jax.experimental import pallas as pl
from jax.experimental.pallas import tpu as pltpu

_MASK_VALUE = -1e30  # finite "minus infinity" for masked (padded) kv columns


# ---------------------------------------------------------------------------
# Kernel 1: fused q/k/v 1x1-conv projections (W @ x_tile + b), bf16 outputs.
# ---------------------------------------------------------------------------
def _qkv_proj_kernel(x_ref, wq_ref, bq_ref, wk_ref, bk_ref, wv_ref, bv_ref,
                     q_ref, k_ref, v_ref):
    x = x_ref[0]                                                   # (C, tp) bf16

    def proj(w_ref, b_ref):
        y = jnp.dot(w_ref[...], x, preferred_element_type=jnp.float32)
        return (y + b_ref[...]).astype(jnp.bfloat16)

    q_ref[0] = proj(wq_ref, bq_ref)        # softmax scale folded into wq / bq
    k_ref[0] = proj(wk_ref, bk_ref)
    v_ref[0] = proj(wv_ref, bv_ref)


# ---------------------------------------------------------------------------
# Kernel 2: flash-style attention over (batch, q-tile, kv-tile) + f32 residual.
# ---------------------------------------------------------------------------
def _make_attn_kernel(tk, l_valid, needs_mask, use_bf16_exp):
    def kernel(q_ref, k_ref, v_ref, xres_ref, o_ref, acc_scr, m_scr, l_scr):
        ki = pl.program_id(2)

        @pl.when(ki == 0)
        def _():
            m_scr[...] = jnp.full_like(m_scr, -jnp.inf)
            l_scr[...] = jnp.zeros_like(l_scr)
            acc_scr[...] = jnp.zeros_like(acc_scr)

        k = k_ref[0]                                               # (C, tk) bf16
        v = v_ref[0]                                               # (C, tk) bf16

        # s_t[j, i] = <k_j, q_i>; contraction over C (scale already in q).
        # TODO(synk): verify via pl.lower_as_mlir that this contraction does not
        # emit an explicit vxpose; if it does, store q transposed instead.
        s_t = lax.dot_general(k, q_ref[0],
                              dimension_numbers=(((0,), (0,)), ((), ())),
                              preferred_element_type=jnp.float32)  # (tk, tq) f32

        if needs_mask:  # static: only when L was padded
            col = lax.broadcasted_iota(jnp.int32, s_t.shape, 0) + ki * tk
            s_t = jnp.where(col < l_valid, s_t, _MASK_VALUE)

        # --- online softmax update -----------------------------------------
        m_prev = m_scr[...]                                        # (1, tq)
        m_new = jnp.maximum(m_prev, jnp.max(s_t, axis=0, keepdims=True))
        alpha = jnp.exp(m_prev - m_new)
        if use_bf16_exp:
            # bf16 EUP exp (v6e / v7x only); p feeds a bf16 matmul anyway.
            p = jnp.exp((s_t - m_new).astype(jnp.bfloat16))        # (tk, tq)
            p_sum = jnp.sum(p.astype(jnp.float32), axis=0, keepdims=True)
        else:
            p_f32 = jnp.exp(s_t - m_new)
            p_sum = jnp.sum(p_f32, axis=0, keepdims=True)
            p = p_f32.astype(jnp.bfloat16)
        l_scr[...] = alpha * l_scr[...] + p_sum
        acc_scr[...] = alpha * acc_scr[...] + lax.dot_general(
            v, p, dimension_numbers=(((1,), (0,)), ((), ())),
            preferred_element_type=jnp.float32)                    # (C, tq)
        m_scr[...] = m_new

        # --- finalize: normalize, add f32 residual, store --------------------
        @pl.when(ki == pl.num_programs(2) - 1)
        def _():
            # approx reciprocal = EUP vrcp (~free); use approx=False if closer
            # parity with the f32 softmax is ever required.
            inv_l = pl.reciprocal(l_scr[...], approx=True)
            o_ref[0] = acc_scr[...] * inv_l + xres_ref[0]          # exact f32 x

    return kernel


# ---------------------------------------------------------------------------
# Helpers
# ---------------------------------------------------------------------------
def _device_kind():
    try:
        return jax.devices()[0].device_kind.lower()
    except Exception:
        return ""


def _physical_vmem_bytes():
    try:
        info = pltpu.get_tpu_info()
        return int(getattr(info, "vmem_capacity_bytes", 64 * 2 ** 20))
    except Exception:
        return 64 * 2 ** 20


def _const_spec(shape):
    """BlockSpec for a grid-invariant operand; single-buffered when supported."""
    index_map = lambda *_: (0,) * len(shape)
    if hasattr(pl, "Buffered"):
        try:
            return pl.BlockSpec(shape, index_map, pipeline_mode=pl.Buffered(1))
        except TypeError:          # older BlockSpec without pipeline_mode kwarg
            pass
    return pl.BlockSpec(shape, index_map)


def _attn_vmem_estimate(C, tq, tk):
    return (2 * C * tq * 2              # q blocks (double-buffered, bf16)
            + 2 * 2 * C * tk * 2        # k + v blocks
            + 2 * C * tq * 4            # f32 residual blocks
            + 2 * C * tq * 4            # f32 output blocks
            + C * tq * 4 + 2 * tq * 4   # acc / m / l scratch
            + 3 * tq * tk * 4)          # s_t / p temporaries


def _proj_vmem_estimate(C, tp):
    return (2 * C * tp * 2                       # x blocks
            + 3 * 2 * C * tp * 2                 # q/k/v output blocks
            + 2 * 3 * (C * C * 2 + C * 4)        # weights + biases (worst case 2x)
            + 3 * C * tp * 4)                    # f32 matmul temporaries


def _choose_tiles(L, C, budget, big_vmem):
    """Pick (tq, tk, Lp) with tq | Lp and tk | Lp."""
    if L <= 256:
        return L, L, L                 # single tile; full-extent block is legal
    Lp = -(-L // 128) * 128            # pad length to a multiple of 128
    tq = 256 if Lp % 256 == 0 else 128
    tk_candidates = (512, 256, 128) if big_vmem else (256, 128)
    for cand in tk_candidates:
        if Lp % cand == 0 and _attn_vmem_estimate(C, tq, cand) <= 0.6 * budget:
            return tq, cand, Lp
    return tq, 128, Lp


# ---------------------------------------------------------------------------
# Wrapper
# ---------------------------------------------------------------------------
def self_attention_pallas(x_ncl, wq, bq, wk, bk, wv, bv):
    """x_ncl: (B, C, L) f32.  w*: (C, C) 1x1-conv weights (kernel dim squeezed).
    b*: (C,).  Returns (B, C, L) f32 matching the PyTorch module's forward."""
    B, C, L = x_ncl.shape
    scale = C ** (-0.5)

    kind = _device_kind()
    phys_vmem = _physical_vmem_bytes()
    big_vmem = phys_vmem >= 128 * 2 ** 20                 # v5e / v6e
    budget = (100 * 2 ** 20) if big_vmem else (52 * 2 ** 20)   # v7x: 64 MiB/TC
    use_bf16_exp = any(t in kind for t in ("v6", "v7", "tpu7"))  # not on v5e
    two_cores = ("v7" in kind) or ("tpu7" in kind)        # v7x: 2 TC / chip

    tq, tk, Lp = _choose_tiles(L, C, budget, big_vmem)
    n_q = Lp // tq
    # v7x megacore: keep the parallel extent B * n_q even so neither TC idles.
    if two_cores and (B * n_q) % 2 == 1 and tq >= 256:
        tq //= 2
        n_q = Lp // tq
    n_kv = Lp // tk
    tp = tk                                               # projection L-tile

    # Pad the length axis with zeros; padded kv columns are masked inside the
    # attention kernel and padded q columns are sliced off at the end.
    x_f32 = x_ncl.astype(jnp.float32)
    if Lp != L:
        x_f32 = jnp.pad(x_f32, ((0, 0), (0, 0), (0, Lp - L)))
    x_bf = x_f32.astype(jnp.bfloat16)                     # NCL kept: no transposes

    # Fold the 1/sqrt(C) softmax scale into the query projection; bf16 matmul
    # operands, f32 biases (accumulation is f32 inside the kernels).
    wq_s = (wq * scale).astype(jnp.bfloat16)
    wk_b = wk.astype(jnp.bfloat16)
    wv_b = wv.astype(jnp.bfloat16)
    bq_s = (bq * scale).astype(jnp.float32).reshape(C, 1)
    bk_c = bk.astype(jnp.float32).reshape(C, 1)
    bv_c = bv.astype(jnp.float32).reshape(C, 1)

    # ---------------- kernel 1: q/k/v projections (computed once) ------------
    qkv_shape = jax.ShapeDtypeStruct((B, C, Lp), jnp.bfloat16)
    q, k, v = pl.pallas_call(
        _qkv_proj_kernel,
        out_shape=(qkv_shape, qkv_shape, qkv_shape),
        grid_spec=pltpu.PrefetchScalarGridSpec(
            num_scalar_prefetch=0,
            grid=(B, Lp // tp),
            in_specs=[
                pl.BlockSpec((1, C, tp), lambda b, l: (b, 0, l)),
                _const_spec((C, C)), _const_spec((C, 1)),   # wq*scale, bq*scale
                _const_spec((C, C)), _const_spec((C, 1)),   # wk, bk
                _const_spec((C, C)), _const_spec((C, 1)),   # wv, bv
            ],
            out_specs=[pl.BlockSpec((1, C, tp), lambda b, l: (b, 0, l))] * 3,
        ),
        compiler_params=pltpu.CompilerParams(
            dimension_semantics=("parallel", "parallel"),
            vmem_limit_bytes=int(min(budget, max(32 * 2 ** 20,
                                                 2 * _proj_vmem_estimate(C, tp)))),
        ),
    )(x_bf, wq_s, bq_s, wk_b, bk_c, wv_b, bv_c)

    # ---------------- kernel 2: attention + residual -------------------------
    attn_kernel = _make_attn_kernel(tk=tk, l_valid=L, needs_mask=(Lp != L),
                                    use_bf16_exp=use_bf16_exp)
    out = pl.pallas_call(
        attn_kernel,
        out_shape=jax.ShapeDtypeStruct((B, C, Lp), jnp.float32),
        grid_spec=pltpu.PrefetchScalarGridSpec(
            num_scalar_prefetch=0,
            grid=(B, n_q, n_kv),                    # kv (reduction) axis last
            in_specs=[
                pl.BlockSpec((1, C, tq), lambda b, qi, ki: (b, 0, qi)),  # q
                pl.BlockSpec((1, C, tk), lambda b, qi, ki: (b, 0, ki)),  # k
                pl.BlockSpec((1, C, tk), lambda b, qi, ki: (b, 0, ki)),  # v
                pl.BlockSpec((1, C, tq), lambda b, qi, ki: (b, 0, qi)),  # x f32 residual
            ],
            out_specs=pl.BlockSpec((1, C, tq), lambda b, qi, ki: (b, 0, qi)),
            scratch_shapes=[
                pltpu.VMEM((C, tq), jnp.float32),   # output accumulator
                pltpu.VMEM((1, tq), jnp.float32),   # running max  m
                pltpu.VMEM((1, tq), jnp.float32),   # running sum  l
            ]),
        compiler_params=pltpu.CompilerParams(
            dimension_semantics=("parallel", "parallel", "arbitrary"),
            vmem_limit_bytes=int(min(budget, max(32 * 2 ** 20,
                                                 2 * _attn_vmem_estimate(C, tq, tk)))),
        ),
    )(q, k, v, x_f32)

    return out[:, :, :L] if Lp != L else out


# ---------------------------------------------------------------------------
# Pure-JAX reference (mirrors the PyTorch forward, NCL layout, f32).
# ---------------------------------------------------------------------------
def self_attention_ref(x_ncl, wq, bq, wk, bk, wv, bv):
    C = x_ncl.shape[1]
    scale = C ** (-0.5)
    proj = lambda w, b: jnp.einsum('oi,bil->bol', w, x_ncl) + b[None, :, None]
    q, k, v = proj(wq, bq), proj(wk, bk), proj(wv, bv)
    attn = jnp.einsum('bci,bcj->bij', q, k) * scale             # (B, L, L)
    attn = jax.nn.softmax(attn, axis=-1)
    out = jnp.einsum('bcj,bij->bci', v, attn)                   # (B, C, L)
    return out + x_ncl


if __name__ == "__main__":
    def init_params(key, C):
        kq, kk, kv, kbq, kbk, kbv = jax.random.split(key, 6)
        bound = 1.0 / (C ** 0.5)
        u = lambda k, s: jax.random.uniform(k, s, jnp.float32, -bound, bound)
        return (u(kq, (C, C)), u(kbq, (C,)), u(kk, (C, C)), u(kbk, (C,)),
                u(kv, (C, C)), u(kbv, (C,)))

    key = jax.random.PRNGKey(0)

    # Case 1: small shape (single tile, no padding).
    B, C, L = 2, 32, 16
    k_x, k_p, key = jax.random.split(key, 3)
    x = jax.random.normal(k_x, (B, C, L), dtype=jnp.float32)
    wq, bq, wk, bk, wv, bv = init_params(k_p, C)
    out = jax.block_until_ready(self_attention_pallas(x, wq, bq, wk, bk, wv, bv))
    ref = jax.block_until_ready(self_attention_ref(x, wq, bq, wk, bk, wv, bv))
    assert out.shape == (B, C, L)
    err = float(jnp.max(jnp.abs(out - ref)))
    # bf16 matmul operands (+ bf16 exp on v6e/v7x) + approx reciprocal.
    assert err < 5e-2, f"case1 max abs err {err}"

    # Case 2: ragged length (exercises padding, kv masking, multi-tile grid).
    B2, C2, L2 = 1, 16, 300
    k_x2, k_p2, key = jax.random.split(key, 3)
    x2 = jax.random.normal(k_x2, (B2, C2, L2), dtype=jnp.float32)
    p2 = init_params(k_p2, C2)
    out2 = jax.block_until_ready(self_attention_pallas(x2, *p2))
    ref2 = jax.block_until_ready(self_attention_ref(x2, *p2))
    assert out2.shape == (B2, C2, L2)
    err2 = float(jnp.max(jnp.abs(out2 - ref2)))
    assert err2 < 5e-2, f"case2 max abs err {err2}"

    print("KERNEL_OK")
</pallas_src>

<mosaic_0001>
module attributes {stable_mosaic.version = 11 : i64} {
  func.func @_qkv_proj_kernel(%arg0: i32, %arg1: i32, %arg2: memref<1x32x16xbf16, #tpu.memory_space<vmem>>, %arg3: memref<32x32xbf16, #tpu.memory_space<vmem>>, %arg4: memref<32x1xf32, #tpu.memory_space<vmem>>, %arg5: memref<32x32xbf16, #tpu.memory_space<vmem>>, %arg6: memref<32x1xf32, #tpu.memory_space<vmem>>, %arg7: memref<32x32xbf16, #tpu.memory_space<vmem>>, %arg8: memref<32x1xf32, #tpu.memory_space<vmem>>, %arg9: memref<1x32x16xbf16, #tpu.memory_space<vmem>>, %arg10: memref<1x32x16xbf16, #tpu.memory_space<vmem>>, %arg11: memref<1x32x16xbf16, #tpu.memory_space<vmem>>) attributes {dimension_semantics = [#tpu.dimension_semantics<parallel>, #tpu.dimension_semantics<parallel>], iteration_bounds = array<i64: 2, 1>, scalar_prefetch = 0 : i64, scratch_operands = 0 : i64, tpu.core_type = #tpu.core_type<tc>, window_params = [{transform_indices = @transform_0, window_bounds = array<i64: 1, 32, 16>}, {pipeline_mode = #tpu.pipeline_mode<synchronous>, transform_indices = @transform_1, window_bounds = array<i64: 32, 32>}, {pipeline_mode = #tpu.pipeline_mode<synchronous>, transform_indices = @transform_2, window_bounds = array<i64: 32, 1>}, {pipeline_mode = #tpu.pipeline_mode<synchronous>, transform_indices = @transform_3, window_bounds = array<i64: 32, 32>}, {pipeline_mode = #tpu.pipeline_mode<synchronous>, transform_indices = @transform_4, window_bounds = array<i64: 32, 1>}, {pipeline_mode = #tpu.pipeline_mode<synchronous>, transform_indices = @transform_5, window_bounds = array<i64: 32, 32>}, {pipeline_mode = #tpu.pipeline_mode<synchronous>, transform_indices = @transform_6, window_bounds = array<i64: 32, 1>}, {transform_indices = @transform_7, window_bounds = array<i64: 1, 32, 16>}, {transform_indices = @transform_8, window_bounds = array<i64: 1, 32, 16>}, {transform_indices = @transform_9, window_bounds = array<i64: 1, 32, 16>}]} {
    %c0 = arith.constant 0 : index
    %c0_0 = arith.constant 0 : index
    %c0_1 = arith.constant 0 : index
    %0 = vector.load %arg2[%c0, %c0_0, %c0_1] : memref<1x32x16xbf16, #tpu.memory_space<vmem>>, vector<1x32x16xbf16>
    %1 = vector.shape_cast %0 : vector<1x32x16xbf16> to vector<32x16xbf16>
    %c0_2 = arith.constant 0 : index
    %c0_3 = arith.constant 0 : index
    %2 = vector.load %arg3[%c0_2, %c0_3] : memref<32x32xbf16, #tpu.memory_space<vmem>>, vector<32x32xbf16>
    %cst = arith.constant dense<0.000000e+00> : vector<32x16xf32>
    %3 = tpu.matmul %2, %1, %cst {dimension_numbers = #tpu.dot_dimension_numbers<[1], [0], [0], [1], [0, 0, 1, 1], [], []>} : vector<32x32xbf16>, vector<32x16xbf16>, vector<32x16xf32> -> vector<32x16xf32>
    %c0_4 = arith.constant 0 : index
    %c0_5 = arith.constant 0 : index
    %4 = vector.load %arg4[%c0_4, %c0_5] : memref<32x1xf32, #tpu.memory_space<vmem>>, vector<32x1xf32>
    %5 = vector.broadcast %4 : vector<32x1xf32> to vector<32x16xf32>
    %6 = arith.addf %3, %5 : vector<32x16xf32>
    %7 = arith.truncf %6 : vector<32x16xf32> to vector<32x16xbf16>
    %c0_6 = arith.constant 0 : index
    %c0_7 = arith.constant 0 : index
    %c0_8 = arith.constant 0 : index
    %8 = vector.load %arg9[%c0_6, %c0_7, %c0_8] : memref<1x32x16xbf16, #tpu.memory_space<vmem>>, vector<1x32x16xbf16>
    %9 = vector.shape_cast %8 : vector<1x32x16xbf16> to vector<32x16xbf16>
    %10 = vector.shape_cast %7 : vector<32x16xbf16> to vector<1x32x16xbf16>
    tpu.vector_store %arg9[%c0_6, %c0_7, %c0_8], %10 {strides = array<i32>} : memref<1x32x16xbf16, #tpu.memory_space<vmem>>, vector<1x32x16xbf16>,
    %c0_9 = arith.constant 0 : index
    %c0_10 = arith.constant 0 : index
    %11 = vector.load %arg5[%c0_9, %c0_10] : memref<32x32xbf16, #tpu.memory_space<vmem>>, vector<32x32xbf16>
    %cst_11 = arith.constant dense<0.000000e+00> : vector<32x16xf32>
    %12 = tpu.matmul %11, %1, %cst_11 {dimension_numbers = #tpu.dot_dimension_numbers<[1], [0], [0], [1], [0, 0, 1, 1], [], []>} : vector<32x32xbf16>, vector<32x16xbf16>, vector<32x16xf32> -> vector<32x16xf32>
    %c0_12 = arith.constant 0 : index
    %c0_13 = arith.constant 0 : index
    %13 = vector.load %arg6[%c0_12, %c0_13] : memref<32x1xf32, #tpu.memory_space<vmem>>, vector<32x1xf32>
    %14 = vector.broadcast %13 : vector<32x1xf32> to vector<32x16xf32>
    %15 = arith.addf %12, %14 : vector<32x16xf32>
    %16 = arith.truncf %15 : vector<32x16xf32> to vector<32x16xbf16>
    %c0_14 = arith.constant 0 : index
    %c0_15 = arith.constant 0 : index
    %c0_16 = arith.constant 0 : index
    %17 = vector.load %arg10[%c0_14, %c0_15, %c0_16] : memref<1x32x16xbf16, #tpu.memory_space<vmem>>, vector<1x32x16xbf16>
    %18 = vector.shape_cast %17 : vector<1x32x16xbf16> to vector<32x16xbf16>
    %19 = vector.shape_cast %16 : vector<32x16xbf16> to vector<1x32x16xbf16>
    tpu.vector_store %arg10[%c0_14, %c0_15, %c0_16], %19 {strides = array<i32>} : memref<1x32x16xbf16, #tpu.memory_space<vmem>>, vector<1x32x16xbf16>,
    %c0_17 = arith.constant 0 : index
    %c0_18 = arith.constant 0 : index
    %20 = vector.load %arg7[%c0_17, %c0_18] : memref<32x32xbf16, #tpu.memory_space<vmem>>, vector<32x32xbf16>
    %cst_19 = arith.constant dense<0.000000e+00> : vector<32x16xf32>
    %21 = tpu.matmul %20, %1, %cst_19 {dimension_numbers = #tpu.dot_dimension_numbers<[1], [0], [0], [1], [0, 0, 1, 1], [], []>} : vector<32x32xbf16>, vector<32x16xbf16>, vector<32x16xf32> -> vector<32x16xf32>
    %c0_20 = arith.constant 0 : index
    %c0_21 = arith.constant 0 : index
    %22 = vector.load %arg8[%c0_20, %c0_21] : memref<32x1xf32, #tpu.memory_space<vmem>>, vector<32x1xf32>
    %23 = vector.broadcast %22 : vector<32x1xf32> to vector<32x16xf32>
    %24 = arith.addf %21, %23 : vector<32x16xf32>
    %25 = arith.truncf %24 : vector<32x16xf32> to vector<32x16xbf16>
    %c0_22 = arith.constant 0 : index
    %c0_23 = arith.constant 0 : index
    %c0_24 = arith.constant 0 : index
    %26 = vector.load %arg11[%c0_22, %c0_23, %c0_24] : memref<1x32x16xbf16, #tpu.memory_space<vmem>>, vector<1x32x16xbf16>
    %27 = vector.shape_cast %26 : vector<1x32x16xbf16> to vector<32x16xbf16>
    %28 = vector.shape_cast %25 : vector<32x16xbf16> to vector<1x32x16xbf16>
    tpu.vector_store %arg11[%c0_22, %c0_23, %c0_24], %28 {strides = array<i32>} : memref<1x32x16xbf16, #tpu.memory_space<vmem>>, vector<1x32x16xbf16>,
    return
  }
  func.func @transform_0(%arg0: i32, %arg1: i32) -> (i32, i32, i32) {
    %c0_i32 = arith.constant 0 : i32
    %c0_i32_0 = arith.constant 0 : i32
    return %arg0, %c0_i32, %arg1 : i32, i32, i32
  }
  func.func @transform_1(%arg0: i32, %arg1: i32) -> (i32, i32) {
    %c0_i32 = arith.constant 0 : i32
    %c0_i32_0 = arith.constant 0 : i32
    %c0_i32_1 = arith.constant 0 : i32
    return %c0_i32, %c0_i32_0 : i32, i32
  }
  func.func @transform_2(%arg0: i32, %arg1: i32) -> (i32, i32) {
    %c0_i32 = arith.constant 0 : i32
    %c0_i32_0 = arith.constant 0 : i32
    %c0_i32_1 = arith.constant 0 : i32
    return %c0_i32, %c0_i32_0 : i32, i32
  }
  func.func @transform_3(%arg0: i32, %arg1: i32) -> (i32, i32) {
    %c0_i32 = arith.constant 0 : i32
    %c0_i32_0 = arith.constant 0 : i32
    %c0_i32_1 = arith.constant 0 : i32
    return %c0_i32, %c0_i32_0 : i32, i32
  }
  func.func @transform_4(%arg0: i32, %arg1: i32) -> (i32, i32) {
    %c0_i32 = arith.constant 0 : i32
    %c0_i32_0 = arith.constant 0 : i32
    %c0_i32_1 = arith.constant 0 : i32
    return %c0_i32, %c0_i32_0 : i32, i32
  }
  func.func @transform_5(%arg0: i32, %arg1: i32) -> (i32, i32) {
    %c0_i32 = arith.constant 0 : i32
    %c0_i32_0 = arith.constant 0 : i32
    %c0_i32_1 = arith.constant 0 : i32
    return %c0_i32, %c0_i32_0 : i32, i32
  }
  func.func @transform_6(%arg0: i32, %arg1: i32) -> (i32, i32) {
    %c0_i32 = arith.constant 0 : i32
    %c0_i32_0 = arith.constant 0 : i32
    %c0_i32_1 = arith.constant 0 : i32
    return %c0_i32, %c0_i32_0 : i32, i32
  }
  func.func @transform_7(%arg0: i32, %arg1: i32) -> (i32, i32, i32) {
    %c0_i32 = arith.constant 0 : i32
    %c0_i32_0 = arith.constant 0 : i32
    return %arg0, %c0_i32, %arg1 : i32, i32, i32
  }
  func.func @transform_8(%arg0: i32, %arg1: i32) -> (i32, i32, i32) {
    %c0_i32 = arith.constant 0 : i32
    %c0_i32_0 = arith.constant 0 : i32
    return %arg0, %c0_i32, %arg1 : i32, i32, i32
  }
  func.func @transform_9(%arg0: i32, %arg1: i32) -> (i32, i32, i32) {
    %c0_i32 = arith.constant 0 : i32
    %c0_i32_0 = arith.constant 0 : i32
    return %arg0, %c0_i32, %arg1 : i32, i32, i32
  }
}

</mosaic_0001>

<llo_original>
// kernel: tpu_custom_call.1
$region0: #{tpu_custom_call.1}
  #allocation0 [shape = 'u32[]', space=smem, size = 0x4, offset = 0x4, fixed_abs, tag = 'smem constant byte address 0x4 - core index']
  #allocation1 [shape = 'u32[144,128]{1,0:T(1,128)}', space=vmem, size = 0x12000, scoped, tag = 'internal scratch']
  %s0 = inlined_call_operand.vmem [shape: bf16[2,32,16], index: 0, kind: input, shape index: {}]
  %s1 = inlined_call_operand.vmem [shape: bf16[32,32], index: 1, kind: input, shape index: {}]
  %s2 = inlined_call_operand.vmem [shape: f32[32,1], index: 2, kind: input, shape index: {}]
  %s3 = inlined_call_operand.vmem [shape: bf16[32,32], index: 3, kind: input, shape index: {}]
  %s4 = inlined_call_operand.vmem [shape: f32[32,1], index: 4, kind: input, shape index: {}]
  %s5 = inlined_call_operand.vmem [shape: bf16[32,32], index: 5, kind: input, shape index: {}]
  %s6 = inlined_call_operand.vmem [shape: f32[32,1], index: 6, kind: input, shape index: {}]
  %s7 = inlined_call_operand.vmem [shape: bf16[2,32,16], index: 7, kind: output, shape index: {0}]
  %s8 = inlined_call_operand.vmem [shape: bf16[2,32,16], index: 8, kind: output, shape index: {1}]
  %s9 = inlined_call_operand.vmem [shape: bf16[2,32,16], index: 9, kind: output, shape index: {2}]
  %10 = xla_tuple %s7, %s8, %s9
  %s11 = sld [smem:[#allocation0]]
  $region77: #{tpu_custom_call.1} parent=0
    _
  %s13 = ssub.s32 1, %s11
  %s14 = scalar_select 0, %s13, %s11
  loop: start=0, step=1, limit=4
  $region2: #{tpu_custom_call.1} parent=0 // loop_pre_header
    _
  $region3: #{tpu_custom_call.1} parent=0 // loop_header
    %s16 = sphi 0, %s20
    %p17 = scmp.ge.s32.totalorder %s16, 4
    %s23 = sphi 0, %s35
    %s24 = sphi 0, %s31
    %s25 = sphi 0, %s23
    %s26 = sphi 0, %s24
    %s27 = sphi 0, %s25
    %s28 = sphi 0, %s26
    %s40 = sphi 0, %s42
    %s43 = sphi 0, %s40
    %s44 = sphi 0, %s43
    %s60 = sphi 0, %s44
    %s64 = sphi 0, %s64
    %s66 = sphi 0, %s64
    %s67 = sphi 0, %s66
    %s81 = sphi 0, %s67
    %s85 = sphi 0, %s85
    %s87 = sphi 0, %s85
    %s88 = sphi 0, %s87
    %s102 = sphi 0, %s88
    %s106 = sphi 0, %s106
    %s108 = sphi 0, %s106
    %s109 = sphi 0, %s108
    %s123 = sphi 0, %s109
    %s127 = sphi 0, %s127
    %s129 = sphi 0, %s127
    %s130 = sphi 0, %s129
    %s144 = sphi 0, %s130
    %s148 = sphi 0, %s148
    %s150 = sphi 0, %s148
    %s151 = sphi 0, %s150
    %s165 = sphi 0, %s151
    %s169 = sphi 0, %s169
    %s171 = sphi 0, %s169
    %s172 = sphi 0, %s171
    %s186 = sphi 0, %s172
    %s194 = sphi 0, %s196
    %s197 = sphi 0, %s194
    %s198 = sphi 0, %s197
    %s214 = sphi 0, %s198
    %s222 = sphi 0, %s224
    %s225 = sphi 0, %s222
    %s226 = sphi 0, %s225
    %s242 = sphi 0, %s226
    %s250 = sphi 0, %s252
    %s253 = sphi 0, %s250
    %s254 = sphi 0, %s253
    %s270 = sphi 0, %s254
  $region4: #{tpu_custom_call.1} parent=0 // loop_header_branch
    %19 = sbr.rel (%p17) target = $region8
  $region5: #{tpu_custom_call.1} parent=0 // loop_body
    %s21 = ssub.s32 %s16, 1
    %s22 = ssub.s32 %s16, 2
    %s29 = sadd.s32 1, %s24
    %p30 = scmp.ge.s32.totalorder %s29, 1
    %s31 = scalar_select %p30, 0, %s29
    %s32 = sadd.s32 1, %s23
    %s33 = scalar_select %p30, %s32, %s23
    %p34 = scmp.ge.s32.totalorder %s33, 2
    %s35 = scalar_select %p34, 0, %s33
    %s36 = ssub.s32 %s23, %s35
    %s37 = ssub.s32 %s24, %s31
    %s38 = sor.u32 %s36, %s37
    %p39 = scmp.eq.s32.totalorder %s38, 0
    %s41 = sadd.s32 %s40, 1
    %s42 = scalar_select %p39, %s40, %s41
    %p45 = pneg %p39
    %p46 = scmp.eq.s32.totalorder %s16, 1
    %p47 = por %p45, %p46
    %p48 = scmp.ne.s32.totalorder %s40, %s43
    %p49 = scmp.eq.s32.totalorder %s16, 0
    %p50 = por %p48, %p49
    %p51 = scmp.ne.s32.totalorder %s40, %s43
    %p52 = scmp.eq.s32.totalorder %s21, 1
    %p53 = por %p51, %p52
    %p54 = scmp.ne.s32.totalorder %s43, %s44
    %p55 = scmp.eq.s32.totalorder %s21, 0
    %p56 = por %p54, %p55
    %p57 = scmp.ne.s32.totalorder %s43, %s44
    %p58 = scmp.eq.s32.totalorder %s22, 1
    %p59 = por %p57, %p58
    %p61 = scmp.ne.s32.totalorder %s44, %s60
    %p62 = scmp.eq.s32.totalorder %s22, 0
    %p63 = por %p61, %p62
    %s65 = sadd.s32 %s64, 1
    %p68 = scmp.eq.s32.totalorder %s16, 1
    %p69 = scmp.ne.s32.totalorder %s64, %s66
    %p70 = scmp.eq.s32.totalorder %s16, 0
    %p71 = por %p69, %p70
    %p72 = scmp.ne.s32.totalorder %s64, %s66
    %p73 = scmp.eq.s32.totalorder %s21, 1
    %p74 = por %p72, %p73
    %p75 = scmp.ne.s32.totalorder %s66, %s67
    %p76 = scmp.eq.s32.totalorder %s21, 0
    %p77 = por %p75, %p76
    %p78 = scmp.ne.s32.totalorder %s66, %s67
    %p79 = scmp.eq.s32.totalorder %s22, 1
    %p80 = por %p78, %p79
    %p82 = scmp.ne.s32.totalorder %s67, %s81
    %p83 = scmp.eq.s32.totalorder %s22, 0
    %p84 = por %p82, %p83
    %s86 = sadd.s32 %s85, 1
    %p89 = scmp.eq.s32.totalorder %s16, 1
    %p90 = scmp.ne.s32.totalorder %s85, %s87
    %p91 = scmp.eq.s32.totalorder %s16, 0
    %p92 = por %p90, %p91
    %p93 = scmp.ne.s32.totalorder %s85, %s87
    %p94 = scmp.eq.s32.totalorder %s21, 1
    %p95 = por %p93, %p94
    %p96 = scmp.ne.s32.totalorder %s87, %s88
    %p97 = scmp.eq.s32.totalorder %s21, 0
    %p98 = por %p96, %p97
    %p99 = scmp.ne.s32.totalorder %s87, %s88
    %p100 = scmp.eq.s32.totalorder %s22, 1
    %p101 = por %p99, %p100
    %p103 = scmp.ne.s32.totalorder %s88, %s102
    %p104 = scmp.eq.s32.totalorder %s22, 0
    %p105 = por %p103, %p104
    %s107 = sadd.s32 %s106, 1
    %p110 = scmp.eq.s32.totalorder %s16, 1
    %p111 = scmp.ne.s32.totalorder %s106, %s108
    %p112 = scmp.eq.s32.totalorder %s16, 0
    %p113 = por %p111, %p112
    %p114 = scmp.ne.s32.totalorder %s106, %s108
    %p115 = scmp.eq.s32.totalorder %s21, 1
    %p116 = por %p114, %p115
    %p117 = scmp.ne.s32.totalorder %s108, %s109
    %p118 = scmp.eq.s32.totalorder %s21, 0
    %p119 = por %p117, %p118
    %p120 = scmp.ne.s32.totalorder %s108, %s109
    %p121 = scmp.eq.s32.totalorder %s22, 1
    %p122 = por %p120, %p121
    %p124 = scmp.ne.s32.totalorder %s109, %s123
    %p125 = scmp.eq.s32.totalorder %s22, 0
    %p126 = por %p124, %p125
    %s128 = sadd.s32 %s127, 1
    %p131 = scmp.eq.s32.totalorder %s16, 1
    %p132 = scmp.ne.s32.totalorder %s127, %s129
    %p133 = scmp.eq.s32.totalorder %s16, 0
    %p134 = por %p132, %p133
    %p135 = scmp.ne.s32.totalorder %s127, %s129
    %p136 = scmp.eq.s32.totalorder %s21, 1
    %p137 = por %p135, %p136
    %p138 = scmp.ne.s32.totalorder %s129, %s130
    %p139 = scmp.eq.s32.totalorder %s21, 0
    %p140 = por %p138, %p139
    %p141 = scmp.ne.s32.totalorder %s129, %s130
    %p142 = scmp.eq.s32.totalorder %s22, 1
    %p143 = por %p141, %p142
    %p145 = scmp.ne.s32.totalorder %s130, %s144
    %p146 = scmp.eq.s32.totalorder %s22, 0
    %p147 = por %p145, %p146
    %s149 = sadd.s32 %s148, 1
    %p152 = scmp.eq.s32.totalorder %s16, 1
    %p153 = scmp.ne.s32.totalorder %s148, %s150
    %p154 = scmp.eq.s32.totalorder %s16, 0
    %p155 = por %p153, %p154
    %p156 = scmp.ne.s32.totalorder %s148, %s150
    %p157 = scmp.eq.s32.totalorder %s21, 1
    %p158 = por %p156, %p157
    %p159 = scmp.ne.s32.totalorder %s150, %s151
    %p160 = scmp.eq.s32.totalorder %s21, 0
    %p161 = por %p159, %p160
    %p162 = scmp.ne.s32.totalorder %s150, %s151
    %p163 = scmp.eq.s32.totalorder %s22, 1
    %p164 = por %p162, %p163
    %p166 = scmp.ne.s32.totalorder %s151, %s165
    %p167 = scmp.eq.s32.totalorder %s22, 0
    %p168 = por %p166, %p167
    %s170 = sadd.s32 %s169, 1
    %p173 = scmp.eq.s32.totalorder %s16, 1
    %p174 = scmp.ne.s32.totalorder %s169, %s171
    %p175 = scmp.eq.s32.totalorder %s16, 0
    %p176 = por %p174, %p175
    %p177 = scmp.ne.s32.totalorder %s169, %s171
    %p178 = scmp.eq.s32.totalorder %s21, 1
    %p179 = por %p177, %p178
    %p180 = scmp.ne.s32.totalorder %s171, %s172
    %p181 = scmp.eq.s32.totalorder %s21, 0
    %p182 = por %p180, %p181
    %p183 = scmp.ne.s32.totalorder %s171, %s172
    %p184 = scmp.eq.s32.totalorder %s22, 1
    %p185 = por %p183, %p184
    %p187 = scmp.ne.s32.totalorder %s172, %s186
    %p188 = scmp.eq.s32.totalorder %s22, 0
    %p189 = por %p187, %p188
    %s190 = ssub.s32 %s23, %s35
    %s191 = ssub.s32 %s24, %s31
    %s192 = sor.u32 %s190, %s191
    %p193 = scmp.eq.s32.totalorder %s192, 0
    %s195 = sadd.s32 %s194, 1
    %s196 = scalar_select %p193, %s194, %s195
    %p199 = pneg %p193
    %p200 = scmp.eq.s32.totalorder %s16, 1
    %p201 = por %p199, %p200
    %p202 = scmp.ne.s32.totalorder %s194, %s197
    %p203 = scmp.eq.s32.totalorder %s16, 0
    %p204 = por %p202, %p203
    %p205 = scmp.ne.s32.totalorder %s194, %s197
    %p206 = scmp.eq.s32.totalorder %s21, 1
    %p207 = por %p205, %p206
    %p208 = scmp.ne.s32.totalorder %s197, %s198
    %p209 = scmp.eq.s32.totalorder %s21, 0
    %p210 = por %p208, %p209
    %p211 = scmp.ne.s32.totalorder %s197, %s198
    %p212 = scmp.eq.s32.totalorder %s22, 1
    %p213 = por %p211, %p212
    %p215 = scmp.ne.s32.totalorder %s198, %s214
    %p216 = scmp.eq.s32.totalorder %s22, 0
    %p217 = por %p215, %p216
    %s218 = ssub.s32 %s23, %s35
    %s219 = ssub.s32 %s24, %s31
    %s220 = sor.u32 %s218, %s219
    %p221 = scmp.eq.s32.totalorder %s220, 0
    %s223 = sadd.s32 %s222, 1
    %s224 = scalar_select %p221, %s222, %s223
    %p227 = pneg %p221
    %p228 = scmp.eq.s32.totalorder %s16, 1
    %p229 = por %p227, %p228
    %p230 = scmp.ne.s32.totalorder %s222, %s225
    %p231 = scmp.eq.s32.totalorder %s16, 0
    %p232 = por %p230, %p231
    %p233 = scmp.ne.s32.totalorder %s222, %s225
    %p234 = scmp.eq.s32.totalorder %s21, 1
    %p235 = por %p233, %p234
    %p236 = scmp.ne.s32.totalorder %s225, %s226
    %p237 = scmp.eq.s32.totalorder %s21, 0
    %p238 = por %p236, %p237
    %p239 = scmp.ne.s32.totalorder %s225, %s226
    %p240 = scmp.eq.s32.totalorder %s22, 1
    %p241 = por %p239, %p240
    %p243 = scmp.ne.s32.totalorder %s226, %s242
    %p244 = scmp.eq.s32.totalorder %s22, 0
    %p245 = por %p243, %p244
    %s246 = ssub.s32 %s23, %s35
    %s247 = ssub.s32 %s24, %s31
    %s248 = sor.u32 %s246, %s247
    %p249 = scmp.eq.s32.totalorder %s248, 0
    %s251 = sadd.s32 %s250, 1
    %s252 = scalar_select %p249, %s250, %s251
    %p255 = pneg %p249
    %p256 = scmp.eq.s32.totalorder %s16, 1
    %p257 = por %p255, %p256
    %p258 = scmp.ne.s32.totalorder %s250, %s253
    %p259 = scmp.eq.s32.totalorder %s16, 0
    %p260 = por %p258, %p259
    %p261 = scmp.ne.s32.totalorder %s250, %s253
    %p262 = scmp.eq.s32.totalorder %s21, 1
    %p263 = por %p261, %p262
    %p264 = scmp.ne.s32.totalorder %s253, %s254
    %p265 = scmp.eq.s32.totalorder %s21, 0
    %p266 = por %p264, %p265
    %p267 = scmp.ne.s32.totalorder %s253, %s254
    %p268 = scmp.eq.s32.totalorder %s22, 1
    %p269 = por %p267, %p268
    %p271 = scmp.ne.s32.totalorder %s254, %s270
    %p272 = scmp.eq.s32.totalorder %s22, 0
    %p273 = por %p271, %p272
    %p274 = scmp.le.s32.totalorder 1, %s16
    %p275 = scmp.lt.s32.totalorder %s16, 3
    %p276 = pnand %p274, %p275
    %p277 = pneg %p276
    // Predicated region
    $region9: #{tpu_custom_call.1} parent=5 // pred_check
      _
    $region10: #{tpu_custom_call.1} parent=5 // pred_check_branch
      %279 = sbr.rel (%p276) target = $region12
    $region11: #{tpu_custom_call.1} parent=5 // pred_region
      %s280 = ssub.s32 %s16, 1
      // Predicated region
      $region13: #{tpu_custom_call.1} parent=11 // pred_check
        %p281 = pneg %p77
      $region14: #{tpu_custom_call.1} parent=11 // pred_check_branch
        %283 = sbr.rel (%p281) target = $region16
      $region15: #{tpu_custom_call.1} parent=11 // pred_region
        _
      $region16: #{tpu_custom_call.1} parent=11 // pred_fallthru
        _
      // Predicated region
      $region17: #{tpu_custom_call.1} parent=11 // pred_check
        %p284 = pneg %p98
      $region18: #{tpu_custom_call.1} parent=11 // pred_check_branch
        %286 = sbr.rel (%p284) target = $region20
      $region19: #{tpu_custom_call.1} parent=11 // pred_region
        _
      $region20: #{tpu_custom_call.1} parent=11 // pred_fallthru
        _
      // Predicated region
      $region21: #{tpu_custom_call.1} parent=11 // pred_check
        %p287 = pneg %p119
      $region22: #{tpu_custom_call.1} parent=11 // pred_check_branch
        %289 = sbr.rel (%p287) target = $region24
      $region23: #{tpu_custom_call.1} parent=11 // pred_region
        _
      $region24: #{tpu_custom_call.1} parent=11 // pred_fallthru
        _
      // Predicated region
      $region25: #{tpu_custom_call.1} parent=11 // pred_check
        %p290 = pneg %p140
      $region26: #{tpu_custom_call.1} parent=11 // pred_check_branch
        %292 = sbr.rel (%p290) target = $region28
      $region27: #{tpu_custom_call.1} parent=11 // pred_region
        _
      $region28: #{tpu_custom_call.1} parent=11 // pred_fallthru
        _
      // Predicated region
      $region29: #{tpu_custom_call.1} parent=11 // pred_check
        %p293 = pneg %p161
      $region30: #{tpu_custom_call.1} parent=11 // pred_check_branch
        %295 = sbr.rel (%p293) target = $region32
      $region31: #{tpu_custom_call.1} parent=11 // pred_region
        _
      $region32: #{tpu_custom_call.1} parent=11 // pred_fallthru
        _
      // Predicated region
      $region33: #{tpu_custom_call.1} parent=11 // pred_check
        %p296 = pneg %p182
      $region34: #{tpu_custom_call.1} parent=11 // pred_check_branch
        %298 = sbr.rel (%p296) target = $region36
      $region35: #{tpu_custom_call.1} parent=11 // pred_region
        _
      $region36: #{tpu_custom_call.1} parent=11 // pred_fallthru
        _
    $region12: #{tpu_custom_call.1} parent=5 // pred_fallthru
      _
    %p299 = scmp.lt.s32.totalorder %s16, 2
    // Predicated region
    $region37: #{tpu_custom_call.1} parent=5 // pred_check
      %p300 = pneg %p299
    $region38: #{tpu_custom_call.1} parent=5 // pred_check_branch
      %302 = sbr.rel (%p300) target = $region40
    $region39: #{tpu_custom_call.1} parent=5 // pred_region
      // Predicated region
      $region41: #{tpu_custom_call.1} parent=39 // pred_check
        %p303 = pneg %p50
      $region42: #{tpu_custom_call.1} parent=39 // pred_check_branch
        %305 = sbr.rel (%p303) target = $region44
      $region43: #{tpu_custom_call.1} parent=39 // pred_region
        %p306 = scmp.lt.s32.totalorder %s23, 1
        %s307 = scalar_select %p306, %s23, 1
        %p308 = scmp.lt.s32.totalorder %s24, 0
        %s309 = scalar_select %p308, %s24, 0
        %s310 = smul.addr %s307, 4
        %s311 = sadd.s32 %s309, %s310
        %s312 = smul.addr %s311, 4
        %s313 = scalar_lea.vmem %s0, %s312
      $region44: #{tpu_custom_call.1} parent=39 // pred_fallthru
        _
    $region40: #{tpu_custom_call.1} parent=5 // pred_fallthru
      _
    %p314 = scmp.le.s32.totalorder 1, %s16
    %p315 = scmp.lt.s32.totalorder %s16, 3
    %p316 = pnand %p314, %p315
    %p317 = pneg %p316
    // Predicated region
    $region45: #{tpu_custom_call.1} parent=5 // pred_check
      _
    $region46: #{tpu_custom_call.1} parent=5 // pred_check_branch
      %319 = sbr.rel (%p316) target = $region48
    $region47: #{tpu_custom_call.1} parent=5 // pred_region
      %s320 = ssub.s32 %s16, 1
      %p321 = scmp.lt.s32.totalorder %s25, 1
      %s322 = scalar_select %p321, %s25, 1
      %p323 = scmp.lt.s32.totalorder %s26, 0
      %s324 = scalar_select %p323, %s26, 0
      %s325 = smul.addr %s322, 4
      %s326 = sadd.s32 %s324, %s325
      %s327 = smul.addr %s326, 4
      %s328 = scalar_lea.vmem %s0, %s327
      %p329 = pneg %p56
      %p330 = pneg %p53
      %p331 = pneg %p77
      %p332 = pneg %p74
      %p333 = pneg %p98
      %p334 = pneg %p95
      %p335 = pneg %p119
      %p336 = pneg %p116
      %p337 = pneg %p140
      %p338 = pneg %p137
      %p339 = pneg %p161
      %p340 = pneg %p158
      %p341 = pneg %p182
      %p342 = pneg %p179
      %p343 = pneg %p210
      %p344 = pneg %p207
      %p345 = scmp.lt.s32.totalorder %s25, 1
      %s346 = scalar_select %p345, %s25, 1
      %p347 = scmp.lt.s32.totalorder %s26, 0
      %s348 = scalar_select %p347, %s26, 0
      %s349 = smul.addr %s346, 4
      %s350 = sadd.s32 %s348, %s349
      %s351 = smul.addr %s350, 4
      %s352 = scalar_lea.vmem %s7, %s351
      %p353 = pneg %p238
      %p354 = pneg %p235
      %p355 = scmp.lt.s32.totalorder %s25, 1
      %s356 = scalar_select %p355, %s25, 1
      %p357 = scmp.lt.s32.totalorder %s26, 0
      %s358 = scalar_select %p357, %s26, 0
      %s359 = smul.addr %s356, 4
      %s360 = sadd.s32 %s358, %s359
      %s361 = smul.addr %s360, 4
      %s362 = scalar_lea.vmem %s8, %s361
      %p363 = pneg %p266
      %p364 = pneg %p263
      %p365 = scmp.lt.s32.totalorder %s25, 1
      %s366 = scalar_select %p365, %s25, 1
      %p367 = scmp.lt.s32.totalorder %s26, 0
      %s368 = scalar_select %p367, %s26, 0
      %s369 = smul.addr %s366, 4
      %s370 = sadd.s32 %s368, %s369
      %s371 = smul.addr %s370, 4
      %s372 = scalar_lea.vmem %s9, %s371
      %p373 = scmp.lt.s32.totalorder %s25, 1
      %s374 = scalar_select %p373, %s25, 1
      %p375 = scmp.lt.s32.totalorder %s26, 0
      %s376 = scalar_select %p375, %s26, 0
      %s377 = smul.addr %s374, 4
      %s378 = sadd.s32 %s376, %s377
      %s379 = smul.addr %s378, 4
      %s380 = scalar_lea.vmem %s0, %s379
      %p381 = scmp.lt.s32.totalorder %s25, 1
      %s382 = scalar_select %p381, %s25, 1
      %p383 = scmp.lt.s32.totalorder %s26, 0
      %s384 = scalar_select %p383, %s26, 0
      %s385 = smul.addr %s382, 4
      %s386 = sadd.s32 %s384, %s385
      %s387 = smul.addr %s386, 4
      %s388 = scalar_lea.vmem %s7, %s387
      %p389 = scmp.lt.s32.totalorder %s25, 1
      %s390 = scalar_select %p389, %s25, 1
      %p391 = scmp.lt.s32.totalorder %s26, 0
      %s392 = scalar_select %p391, %s26, 0
      %s393 = smul.addr %s390, 4
      %s394 = sadd.s32 %s392, %s393
      %s395 = smul.addr %s394, 4
      %s396 = scalar_lea.vmem %s8, %s395
      %p397 = scmp.lt.s32.totalorder %s25, 1
      %s398 = scalar_select %p397, %s25, 1
      %p399 = scmp.lt.s32.totalorder %s26, 0
      %s400 = scalar_select %p399, %s26, 0
      %s401 = smul.addr %s398, 4
      %s402 = sadd.s32 %s400, %s401
      %s403 = smul.addr %s402, 4
      %s404 = scalar_lea.vmem %s9, %s403
      %v406 = vld [vmem:[%s380] sm:$0xf]
      %v407 = vld [vmem:[%s380 + $0x4] sm:$0xf]
      %v408 = vld [vmem:[%s380 + $0x8] sm:$0xf]
      %v409 = vld [vmem:[%s380 + $0xc] sm:$0xf]
      %v410 = vld [vmem:[%s1] sm:$0xf]
      %v411 = vld [vmem:[%s1 + $0x4] sm:$0xf]
      %v412 = vld [vmem:[%s1 + $0x8] sm:$0xf]
      %v413 = vld [vmem:[%s1 + $0xc] sm:$0xf]
      %v414 = vld [vmem:[%s2] sm:$0xff]
      %v415 = vld [vmem:[%s2 + $0x8] sm:$0xff]
      %v416 = vld [vmem:[%s2 + $0x10] sm:$0xff]
      %v417 = vld [vmem:[%s2 + $0x18] sm:$0xff]
      %419 = vset.pattern.permute.xlu0 0
      %420 = vperm.xlu0 %419, %v414
      %v421 = vpop.permute.xlu0 %420
      %424 = vset.pattern.permute.xlu0 0
      %425 = vperm.xlu0 %424, %v415
      %v426 = vpop.permute.xlu0 %425
      %429 = vset.pattern.permute.xlu0 0
      %430 = vperm.xlu0 %429, %v416
      %v431 = vpop.permute.xlu0 %430
      %434 = vset.pattern.permute.xlu0 0
      %435 = vperm.xlu0 %434, %v417
      %v436 = vpop.permute.xlu0 %435
      %v442 = vunpack.c.l.b16 %v410
      %v443 = vunpack.c.l.b16 %v411
      %v444 = vunpack.c.l.b16 %v412
      %v445 = vunpack.c.l.b16 %v413
      %v446 = vpack.c.b16 %v443, %v442
      %v447 = vpack.c.b16 %v445, %v444
      %v452 = vunpack.c.l.b16 %v406
      %v453 = vunpack.c.l.b16 %v407
      %v454 = vunpack.c.l.b16 %v408
      %v455 = vunpack.c.l.b16 %v409
      %v456 = vpack.c.b16 %v453, %v452
      %v457 = vpack.c.b16 %v455, %v454
      %vm460 = vcmask 261120
      %v462 = vsel %vm460, %v446, 0
      %v465 = vsel %vm460, %v447, 0
      %467 = vmatprep.subr.bf16.mxu0 0
      %468 = vmatpush1.bf16.msra.mxu0 %v456
      %469 = vmatprep.subr.bf16.mxu0 0
      %470 = vmatpush1.bf16.msra.mxu0 %v457
      %471 = vmatprep.subr.bf16.mxu0 0
      %472 = vmatpush1.bf16.msra.mxu0 0
      %473 = vmatprep.subr.bf16.mxu0 0
      %474 = vmatpush1.bf16.msra.mxu0 0
      %475 = vmatprep.subr.bf16.mxu0 0
      %476 = vmatpush1.bf16.msra.mxu0 0
      %477 = vmatprep.subr.bf16.mxu0 0
      %478 = vmatpush1.bf16.msra.mxu0 0
      %479 = vmatprep.subr.bf16.mxu0 0
      %480 = vmatpush1.bf16.msra.mxu0 0
      %481 = vmatprep.subr.bf16.mxu0 0
      %482 = vmatpush1.bf16.msra.mxu0 0
      %483 = vmatprep.subr.bf16.mxu0 0
      %484 = vmatpush1.bf16.msra.mxu0 0
      %485 = vmatprep.subr.bf16.mxu0 0
      %486 = vmatpush1.bf16.msra.mxu0 0
      %487 = vmatprep.subr.bf16.mxu0 0
      %488 = vmatpush1.bf16.msra.mxu0 0
      %489 = vmatprep.subr.bf16.mxu0 0
      %490 = vmatpush1.bf16.msra.mxu0 0
      %491 = vmatprep.subr.bf16.mxu0 0
      %492 = vmatpush1.bf16.msra.mxu0 0
      %493 = vmatprep.subr.bf16.mxu0 0
      %494 = vmatpush1.bf16.msra.mxu0 0
      %495 = vmatprep.subr.bf16.mxu0 0
      %496 = vmatpush1.bf16.msra.mxu0 0
      %497 = vmatprep.subr.bf16.mxu0 0
      %498 = vmatpush1.bf16.msra.mxu0 0
      %499 = vmatprep.mubr.bf16.mxu0 0
      %500 = vmatmul.mubr.bf16.gmra.mrb[0].mxu0 %v462
      %v501 = vpop.f32.mrb[0].mxu0
      %v502 = vadd.f32 %v421, %v501
      %v503 = vpop.f32.mrb[0].mxu0
      %v504 = vpop.f32.mrb[0].mxu0
      %v505 = vadd.f32 %v426, %v504
      %v506 = vpop.f32.mrb[0].mxu0
      %507 = vmatprep.mubr.bf16.mxu0 0
      %508 = vmatmul.mubr.bf16.gmra.mrb[0].mxu0 %v465
      %v509 = vpop.f32.mrb[0].mxu0
      %v510 = vadd.f32 %v431, %v509
      %v511 = vpop.f32.mrb[0].mxu0
      %v512 = vpop.f32.mrb[0].mxu0
      %v513 = vadd.f32 %v436, %v512
      %v514 = vpop.f32.mrb[0].mxu0
      %515 = vdwg.mxu0
      %v516 = vpack.c.bf16 %v505, %v502
      %v517 = vpack.c.bf16 %v513, %v510
      %v520 = vunpack.c.l.b16 %v516
      %v521 = vunpack.c.h.b16 %v516
      %v522 = vunpack.c.l.b16 %v517
      %v523 = vunpack.c.h.b16 %v517
      %v524 = vpack.c.b16 %v520, %v520
      %v525 = vpack.c.b16 %v521, %v521
      %v526 = vpack.c.b16 %v522, %v522
      %v527 = vpack.c.b16 %v523, %v523
      %vm532 = vcmask 125952
      %533 = vst.msk [vmem:[%s388] sm:$0xf] %vm532, %v524
      %534 = vst.msk [vmem:[%s388 + $0x4] sm:$0xf] %vm532, %v525
      %535 = vst.msk [vmem:[%s388 + $0x8] sm:$0xf] %vm532, %v526
      %536 = vst.msk [vmem:[%s388 + $0xc] sm:$0xf] %vm532, %v527
      %v537 = vld [vmem:[%s3] sm:$0xf]
      %v538 = vld [vmem:[%s3 + $0x4] sm:$0xf]
      %v539 = vld [vmem:[%s3 + $0x8] sm:$0xf]
      %v540 = vld [vmem:[%s3 + $0xc] sm:$0xf]
      %v541 = vld [vmem:[%s4] sm:$0xff]
      %v542 = vld [vmem:[%s4 + $0x8] sm:$0xff]
      %v543 = vld [vmem:[%s4 + $0x10] sm:$0xff]
      %v544 = vld [vmem:[%s4 + $0x18] sm:$0xff]
      %546 = vset.pattern.permute.xlu0 0
      %547 = vperm.xlu0 %546, %v541
      %v548 = vpop.permute.xlu0 %547
      %551 = vset.pattern.permute.xlu0 0
      %552 = vperm.xlu0 %551, %v542
      %v553 = vpop.permute.xlu0 %552
      %556 = vset.pattern.permute.xlu0 0
      %557 = vperm.xlu0 %556, %v543
      %v558 = vpop.permute.xlu0 %557
      %561 = vset.pattern.permute.xlu0 0
      %562 = vperm.xlu0 %561, %v544
      %v563 = vpop.permute.xlu0 %562
      %v569 = vunpack.c.l.b16 %v537
      %v570 = vunpack.c.l.b16 %v538
      %v571 = vunpack.c.l.b16 %v539
      %v572 = vunpack.c.l.b16 %v540
      %v573 = vpack.c.b16 %v570, %v569
      %v574 = vpack.c.b16 %v572, %v571
      %v576 = vsel %vm460, %v573, 0
      %v579 = vsel %vm460, %v574, 0
      %581 = vmatprep.subr.bf16.mxu0 0
      %582 = vmatpush1.bf16.msra.mxu0 %v456
      %583 = vmatprep.subr.bf16.mxu0 0
      %584 = vmatpush1.bf16.msra.mxu0 %v457
      %585 = vmatprep.subr.bf16.mxu0 0
      %586 = vmatpush1.bf16.msra.mxu0 0
      %587 = vmatprep.subr.bf16.mxu0 0
      %588 = vmatpush1.bf16.msra.mxu0 0
      %589 = vmatprep.subr.bf16.mxu0 0
      %590 = vmatpush1.bf16.msra.mxu0 0
      %591 = vmatprep.subr.bf16.mxu0 0
      %592 = vmatpush1.bf16.msra.mxu0 0
      %593 = vmatprep.subr.bf16.mxu0 0
      %594 = vmatpush1.bf16.msra.mxu0 0
      %595 = vmatprep.subr.bf16.mxu0 0
      %596 = vmatpush1.bf16.msra.mxu0 0
      %597 = vmatprep.subr.bf16.mxu0 0
      %598 = vmatpush1.bf16.msra.mxu0 0
      %599 = vmatprep.subr.bf16.mxu0 0
      %600 = vmatpush1.bf16.msra.mxu0 0
      %601 = vmatprep.subr.bf16.mxu0 0
      %602 = vmatpush1.bf16.msra.mxu0 0
      %603 = vmatprep.subr.bf16.mxu0 0
      %604 = vmatpush1.bf16.msra.mxu0 0
      %605 = vmatprep.subr.bf16.mxu0 0
      %606 = vmatpush1.bf16.msra.mxu0 0
      %607 = vmatprep.subr.bf16.mxu0 0
      %608 = vmatpush1.bf16.msra.mxu0 0
      %609 = vmatprep.subr.bf16.mxu0 0
      %610 = vmatpush1.bf16.msra.mxu0 0
      %611 = vmatprep.subr.bf16.mxu0 0
      %612 = vmatpush1.bf16.msra.mxu0 0
      %613 = vmatprep.mubr.bf16.mxu0 0
      %614 = vmatmul.mubr.bf16.gmra.mrb[0].mxu0 %v576
      %v615 = vpop.f32.mrb[0].mxu0
      %v616 = vadd.f32 %v548, %v615
      %v617 = vpop.f32.mrb[0].mxu0
      %v618 = vpop.f32.mrb[0].mxu0
      %v619 = vadd.f32 %v553, %v618
      %v620 = vpop.f32.mrb[0].mxu0
      %621 = vmatprep.mubr.bf16.mxu0 0
      %622 = vmatmul.mubr.bf16.gmra.mrb[0].mxu0 %v579
      %v623 = vpop.f32.mrb[0].mxu0
      %v624 = vadd.f32 %v558, %v623
      %v625 = vpop.f32.mrb[0].mxu0
      %v626 = vpop.f32.mrb[0].mxu0
      %v627 = vadd.f32 %v563, %v626
      %v628 = vpop.f32.mrb[0].mxu0
      %629 = vdwg.mxu0
      %v630 = vpack.c.bf16 %v619, %v616
      %v631 = vpack.c.bf16 %v627, %v624
      %v634 = vunpack.c.l.b16 %v630
      %v635 = vunpack.c.h.b16 %v630
      %v636 = vunpack.c.l.b16 %v631
      %v637 = vunpack.c.h.b16 %v631
      %v638 = vpack.c.b16 %v634, %v634
      %v639 = vpack.c.b16 %v635, %v635
      %v640 = vpack.c.b16 %v636, %v636
      %v641 = vpack.c.b16 %v637, %v637
      %646 = vst.msk [vmem:[%s396] sm:$0xf] %vm532, %v638
      %647 = vst.msk [vmem:[%s396 + $0x4] sm:$0xf] %vm532, %v639
      %648 = vst.msk [vmem:[%s396 + $0x8] sm:$0xf] %vm532, %v640
      %649 = vst.msk [vmem:[%s396 + $0xc] sm:$0xf] %vm532, %v641
      %v650 = vld [vmem:[%s5] sm:$0xf]
      %v651 = vld [vmem:[%s5 + $0x4] sm:$0xf]
      %v652 = vld [vmem:[%s5 + $0x8] sm:$0xf]
      %v653 = vld [vmem:[%s5 + $0xc] sm:$0xf]
      %v654 = vld [vmem:[%s6] sm:$0xff]
      %v655 = vld [vmem:[%s6 + $0x8] sm:$0xff]
      %v656 = vld [vmem:[%s6 + $0x10] sm:$0xff]
      %v657 = vld [vmem:[%s6 + $0x18] sm:$0xff]
      %659 = vset.pattern.permute.xlu0 0
      %660 = vperm.xlu0 %659, %v654
      %v661 = vpop.permute.xlu0 %660
      %664 = vset.pattern.permute.xlu0 0
      %665 = vperm.xlu0 %664, %v655
      %v666 = vpop.permute.xlu0 %665
      %669 = vset.pattern.permute.xlu0 0
      %670 = vperm.xlu0 %669, %v656
      %v671 = vpop.permute.xlu0 %670
      %674 = vset.pattern.permute.xlu0 0
      %675 = vperm.xlu0 %674, %v657
      %v676 = vpop.permute.xlu0 %675
      %v682 = vunpack.c.l.b16 %v650
      %v683 = vunpack.c.l.b16 %v651
      %v684 = vunpack.c.l.b16 %v652
      %v685 = vunpack.c.l.b16 %v653
      %v686 = vpack.c.b16 %v683, %v682
      %v687 = vpack.c.b16 %v685, %v684
      %v689 = vsel %vm460, %v686, 0
      %v692 = vsel %vm460, %v687, 0
      %694 = vmatprep.subr.bf16.mxu0 0
      %695 = vmatpush1.bf16.msra.mxu0 %v456
      %696 = vmatprep.subr.bf16.mxu0 0
      %697 = vmatpush1.bf16.msra.mxu0 %v457
      %698 = vmatprep.subr.bf16.mxu0 0
      %699 = vmatpush1.bf16.msra.mxu0 0
      %700 = vmatprep.subr.bf16.mxu0 0
      %701 = vmatpush1.bf16.msra.mxu0 0
      %702 = vmatprep.subr.bf16.mxu0 0
      %703 = vmatpush1.bf16.msra.mxu0 0
      %704 = vmatprep.subr.bf16.mxu0 0
      %705 = vmatpush1.bf16.msra.mxu0 0
      %706 = vmatprep.subr.bf16.mxu0 0
      %707 = vmatpush1.bf16.msra.mxu0 0
      %708 = vmatprep.subr.bf16.mxu0 0
      %709 = vmatpush1.bf16.msra.mxu0 0
      %710 = vmatprep.subr.bf16.mxu0 0
      %711 = vmatpush1.bf16.msra.mxu0 0
      %712 = vmatprep.subr.bf16.mxu0 0
      %713 = vmatpush1.bf16.msra.mxu0 0
      %714 = vmatprep.subr.bf16.mxu0 0
      %715 = vmatpush1.bf16.msra.mxu0 0
      %716 = vmatprep.subr.bf16.mxu0 0
      %717 = vmatpush1.bf16.msra.mxu0 0
      %718 = vmatprep.subr.bf16.mxu0 0
      %719 = vmatpush1.bf16.msra.mxu0 0
      %720 = vmatprep.subr.bf16.mxu0 0
      %721 = vmatpush1.bf16.msra.mxu0 0
      %722 = vmatprep.subr.bf16.mxu0 0
      %723 = vmatpush1.bf16.msra.mxu0 0
      %724 = vmatprep.subr.bf16.mxu0 0
      %725 = vmatpush1.bf16.msra.mxu0 0
      %726 = vmatprep.mubr.bf16.mxu0 0
      %727 = vmatmul.mubr.bf16.gmra.mrb[0].mxu0 %v689
      %v728 = vpop.f32.mrb[0].mxu0
      %v729 = vadd.f32 %v661, %v728
      %v730 = vpop.f32.mrb[0].mxu0
      %v731 = vpop.f32.mrb[0].mxu0
      %v732 = vadd.f32 %v666, %v731
      %v733 = vpop.f32.mrb[0].mxu0
      %734 = vmatprep.mubr.bf16.mxu0 0
      %735 = vmatmul.mubr.bf16.gmra.mrb[0].mxu0 %v692
      %v736 = vpop.f32.mrb[0].mxu0
      %v737 = vadd.f32 %v671, %v736
      %v738 = vpop.f32.mrb[0].mxu0
      %v739 = vpop.f32.mrb[0].mxu0
      %v740 = vadd.f32 %v676, %v739
      %v741 = vpop.f32.mrb[0].mxu0
      %742 = vdwg.mxu0
      %v743 = vpack.c.bf16 %v732, %v729
      %v744 = vpack.c.bf16 %v740, %v737
      %v747 = vunpack.c.l.b16 %v743
      %v748 = vunpack.c.h.b16 %v743
      %v749 = vunpack.c.l.b16 %v744
      %v750 = vunpack.c.h.b16 %v744
      %v751 = vpack.c.b16 %v747, %v747
      %v752 = vpack.c.b16 %v748, %v748
      %v753 = vpack.c.b16 %v749, %v749
      %v754 = vpack.c.b16 %v750, %v750
      %759 = vst.msk [vmem:[%s404] sm:$0xf] %vm532, %v751
      %760 = vst.msk [vmem:[%s404 + $0x4] sm:$0xf] %vm532, %v752
      %761 = vst.msk [vmem:[%s404 + $0x8] sm:$0xf] %vm532, %v753
      %762 = vst.msk [vmem:[%s404 + $0xc] sm:$0xf] %vm532, %v754
      %p763 = scmp.lt.s32.totalorder %s25, 1
      %s764 = scalar_select %p763, %s25, 1
      %p765 = scmp.lt.s32.totalorder %s26, 0
      %s766 = scalar_select %p765, %s26, 0
      %s767 = smul.addr %s764, 4
      %s768 = sadd.s32 %s766, %s767
      %s769 = smul.addr %s768, 4
      %s770 = scalar_lea.vmem %s7, %s769
      %p771 = scmp.lt.s32.totalorder %s25, 1
      %s772 = scalar_select %p771, %s25, 1
      %p773 = scmp.lt.s32.totalorder %s26, 0
      %s774 = scalar_select %p773, %s26, 0
      %s775 = smul.addr %s772, 4
      %s776 = sadd.s32 %s774, %s775
      %s777 = smul.addr %s776, 4
      %s778 = scalar_lea.vmem %s8, %s777
      %p779 = scmp.lt.s32.totalorder %s25, 1
      %s780 = scalar_select %p779, %s25, 1
      %p781 = scmp.lt.s32.totalorder %s26, 0
      %s782 = scalar_select %p781, %s26, 0
      %s783 = smul.addr %s780, 4
      %s784 = sadd.s32 %s782, %s783
      %s785 = smul.addr %s784, 4
      %s786 = scalar_lea.vmem %s9, %s785
      // Predicated region
      $region49: #{tpu_custom_call.1} parent=47 // pred_check
        %p787 = pneg %p207
      $region50: #{tpu_custom_call.1} parent=47 // pred_check_branch
        %789 = sbr.rel (%p787) target = $region52
      $region51: #{tpu_custom_call.1} parent=47 // pred_region
        _
      $region52: #{tpu_custom_call.1} parent=47 // pred_fallthru
        _
      // Predicated region
      $region53: #{tpu_custom_call.1} parent=47 // pred_check
        %p790 = pneg %p235
      $region54: #{tpu_custom_call.1} parent=47 // pred_check_branch
        %792 = sbr.rel (%p790) target = $region56
      $region55: #{tpu_custom_call.1} parent=47 // pred_region
        _
      $region56: #{tpu_custom_call.1} parent=47 // pred_fallthru
        _
      // Predicated region
      $region57: #{tpu_custom_call.1} parent=47 // pred_check
        %p793 = pneg %p263
      $region58: #{tpu_custom_call.1} parent=47 // pred_check_branch
        %795 = sbr.rel (%p793) target = $region60
      $region59: #{tpu_custom_call.1} parent=47 // pred_region
        _
      $region60: #{tpu_custom_call.1} parent=47 // pred_fallthru
        _
    $region48: #{tpu_custom_call.1} parent=5 // pred_fallthru
      _
    %p796 = scmp.le.s32.totalorder 2, %s16
    // Predicated region
    $region61: #{tpu_custom_call.1} parent=5 // pred_check
      %p797 = pneg %p796
    $region62: #{tpu_custom_call.1} parent=5 // pred_check_branch
      %799 = sbr.rel (%p797) target = $region64
    $region63: #{tpu_custom_call.1} parent=5 // pred_region
      %s800 = ssub.s32 %s16, 2
      // Predicated region
      $region65: #{tpu_custom_call.1} parent=63 // pred_check
        %p801 = pneg %p213
      $region66: #{tpu_custom_call.1} parent=63 // pred_check_branch
        %803 = sbr.rel (%p801) target = $region68
      $region67: #{tpu_custom_call.1} parent=63 // pred_region
        %p804 = scmp.lt.s32.totalorder %s27, 1
        %s805 = scalar_select %p804, %s27, 1
        %p806 = scmp.lt.s32.totalorder %s28, 0
        %s807 = scalar_select %p806, %s28, 0
        %s808 = smul.addr %s805, 4
        %s809 = sadd.s32 %s807, %s808
        %s810 = smul.addr %s809, 4
        %s811 = scalar_lea.vmem %s7, %s810
      $region68: #{tpu_custom_call.1} parent=63 // pred_fallthru
        _
      // Predicated region
      $region69: #{tpu_custom_call.1} parent=63 // pred_check
        %p812 = pneg %p241
      $region70: #{tpu_custom_call.1} parent=63 // pred_check_branch
        %814 = sbr.rel (%p812) target = $region72
      $region71: #{tpu_custom_call.1} parent=63 // pred_region
        %p815 = scmp.lt.s32.totalorder %s27, 1
        %s816 = scalar_select %p815, %s27, 1
        %p817 = scmp.lt.s32.totalorder %s28, 0
        %s818 = scalar_select %p817, %s28, 0
        %s819 = smul.addr %s816, 4
        %s820 = sadd.s32 %s818, %s819
        %s821 = smul.addr %s820, 4
        %s822 = scalar_lea.vmem %s8, %s821
      $region72: #{tpu_custom_call.1} parent=63 // pred_fallthru
        _
      // Predicated region
      $region73: #{tpu_custom_call.1} parent=63 // pred_check
        %p823 = pneg %p269
      $region74: #{tpu_custom_call.1} parent=63 // pred_check_branch
        %825 = sbr.rel (%p823) target = $region76
      $region75: #{tpu_custom_call.1} parent=63 // pred_region
        %p826 = scmp.lt.s32.totalorder %s27, 1
        %s827 = scalar_select %p826, %s27, 1
        %p828 = scmp.lt.s32.totalorder %s28, 0
        %s829 = scalar_select %p828, %s28, 0
        %s830 = smul.addr %s827, 4
        %s831 = sadd.s32 %s829, %s830
        %s832 = smul.addr %s831, 4
        %s833 = scalar_lea.vmem %s9, %s832
      $region76: #{tpu_custom_call.1} parent=63 // pred_fallthru
        _
    $region64: #{tpu_custom_call.1} parent=5 // pred_fallthru
      _
  $region6: #{tpu_custom_call.1} parent=0 // loop_footer
    %s20 = sadd.s32 1, %s16
  $region7: #{tpu_custom_call.1} parent=0 // loop_footer_branch
    %15 = sbr.rel target = $region3
  $region8: #{tpu_custom_call.1} parent=0 // loop_exit
    _

</llo_original>
